<compile_context>
chip_gen: v7x
topology: tpu7x:2x2x1
jax: 0.10.0
libtpu: 0.0.40
codegen_flags: <defaults>
</compile_context>

<pallas_src>
import functools
import math

import jax
import jax.numpy as jnp
from jax.experimental import pallas as pl
from jax.experimental.pallas import tpu as pltpu


# ----------------------------------------------------------------------------
# Fused kernel: conv(matmul) + BatchNorm(training) + ReLU + AvgPool + broadcast add
# ----------------------------------------------------------------------------
def _fused_conv_bn_relu_pool_add_kernel(a_ref, w_ref, g_ref, b_ref, o_ref, *,
                                        n, hw):
    # Conv2d as a single MXU matmul over im2col patches.
    # a_ref: (N*H*W, 9*Cin) bf16, w_ref: (9*Cin, Cout) bf16 -> f32 accumulate.
    y = jnp.dot(a_ref[...], w_ref[...], preferred_element_type=jnp.float32)

    # BatchNorm2d (training mode): biased batch statistics over all N*H*W rows.
    # The conv bias is omitted on purpose -- it cancels against the batch mean.
    mean = jnp.mean(y, axis=0, keepdims=True)
    var = jnp.mean(jnp.square(y - mean), axis=0, keepdims=True)
    y = (y - mean) * jax.lax.rsqrt(var + 1e-5) * g_ref[...] + b_ref[...]

    # ReLU.
    y = jnp.maximum(y, 0.0)                               # x1: (N*H*W, Cout)

    # AvgPool2d(4) on the 4x4 map == per-image spatial mean; then `x1 + x2`.
    # The reshape only splits the sublane dim on an exact 8-row tile boundary
    # (hw = 16), so it is layout-preserving.
    c = y.shape[-1]
    y3 = y.reshape(n, hw, c)
    o_ref[...] = y3 + jnp.mean(y3, axis=1, keepdims=True)


# ----------------------------------------------------------------------------
# Wrapper (im2col + weight folding are tiny JAX glue; all compute is in-kernel)
# ----------------------------------------------------------------------------
def broadcast_add_forward(x_nchw, params):
    """Forward pass of the PyTorch `broadcast_add` module (NCHW in / NCHW out)."""
    conv_w = params["conv_w"]          # (Cout, Cin, 3, 3)
    gamma = params["bn_gamma"]         # (Cout,)
    beta = params["bn_beta"]           # (Cout,)
    # params["conv_b"] is intentionally unused: training-mode BN cancels it.

    N, Cin, H, W = x_nchw.shape
    Cout = conv_w.shape[0]
    assert conv_w.shape == (Cout, Cin, 3, 3)
    # The broadcast `x1 + x2` requires AvgPool2d(4) to emit a 1x1 map.
    assert H == 4 and W == 4, "broadcast_add implies a 4x4 spatial input"

    x = jnp.transpose(x_nchw, (0, 2, 3, 1)).astype(jnp.float32)   # NHWC

    # im2col (3x3, pad=1, stride=1), patch-minor order (ky, kx, cin).
    xp = jnp.pad(x, ((0, 0), (1, 1), (1, 1), (0, 0)))
    cols = [xp[:, ky:ky + H, kx:kx + W, :] for ky in range(3) for kx in range(3)]
    a = jnp.concatenate(cols, axis=-1).reshape(N * H * W, 9 * Cin)
    a = a.astype(jnp.bfloat16)                                    # MXU operand

    # Fold the conv weight to (ky, kx, cin) x cout to match the patch order.
    wm = jnp.transpose(conv_w, (2, 3, 1, 0)).reshape(9 * Cin, Cout)
    wm = wm.astype(jnp.bfloat16)                                  # MXU operand

    M, K = a.shape
    HW = H * W

    out3 = pl.pallas_call(
        functools.partial(_fused_conv_bn_relu_pool_add_kernel, n=N, hw=HW),
        out_shape=jax.ShapeDtypeStruct((N, HW, Cout), jnp.float32),
        grid=(1,),
        in_specs=[
            pl.BlockSpec((M, K), lambda i: (0, 0)),
            pl.BlockSpec((K, Cout), lambda i: (0, 0)),
            pl.BlockSpec((1, Cout), lambda i: (0, 0)),
            pl.BlockSpec((1, Cout), lambda i: (0, 0)),
        ],
        out_specs=pl.BlockSpec((N, HW, Cout), lambda i: (0, 0, 0)),
        compiler_params=pltpu.CompilerParams(
            dimension_semantics=("arbitrary",),
            # Whole working set is < 100 KiB; 32 MiB leaves ample headroom even
            # under v7x's 64 MiB physical VMEM.
            vmem_limit_bytes=32 * 1024 * 1024,
        ),
    )(a, wm, gamma.reshape(1, Cout), beta.reshape(1, Cout))

    # (N, H*W, Cout) -> NCHW to match the PyTorch module's output layout.
    return jnp.transpose(out3.reshape(N, H, W, Cout), (0, 3, 1, 2))


# ----------------------------------------------------------------------------
# Pure-JAX f32 reference (keeps the conv bias; training-mode BN cancels it)
# ----------------------------------------------------------------------------
def reference_forward(x_nchw, params):
    conv_w, conv_b = params["conv_w"], params["conv_b"]
    gamma, beta = params["bn_gamma"], params["bn_beta"]
    x = jnp.transpose(x_nchw, (0, 2, 3, 1)).astype(jnp.float32)
    y = jax.lax.conv_general_dilated(
        x, jnp.transpose(conv_w, (2, 3, 1, 0)),
        window_strides=(1, 1), padding=((1, 1), (1, 1)),
        dimension_numbers=("NHWC", "HWIO", "NHWC")) + conv_b
    mean = jnp.mean(y, axis=(0, 1, 2), keepdims=True)
    var = jnp.mean(jnp.square(y - mean), axis=(0, 1, 2), keepdims=True)
    y = (y - mean) * jax.lax.rsqrt(var + 1e-5) * gamma + beta
    y = jnp.maximum(y, 0.0)                                     # x1
    pooled = jnp.mean(y, axis=(1, 2), keepdims=True)            # AvgPool2d(4) on 4x4
    out = y + pooled
    return jnp.transpose(out, (0, 3, 1, 2))


# ----------------------------------------------------------------------------
# Deterministic parameters (PyTorch-style init scales; BN default weight/bias)
# ----------------------------------------------------------------------------
def make_params(key):
    k_w, k_b = jax.random.split(key)
    cin, cout, ksz = 3, 128, 3
    bound = 1.0 / math.sqrt(cin * ksz * ksz)
    return {
        "conv_w": jax.random.uniform(k_w, (cout, cin, ksz, ksz), jnp.float32,
                                     -bound, bound),
        "conv_b": jax.random.uniform(k_b, (cout,), jnp.float32, -bound, bound),
        # PyTorch BatchNorm2d default init: weight = 1, bias = 0.
        "bn_gamma": jnp.ones((cout,), jnp.float32),
        "bn_beta": jnp.zeros((cout,), jnp.float32),
    }


# ----------------------------------------------------------------------------
if __name__ == "__main__":
    key = jax.random.PRNGKey(0)
    kx, kp = jax.random.split(key)
    # AvgPool2d(4) must reduce the map to 1x1 for `x1 + x2` to broadcast, so
    # the module implies a 4x4 spatial input.
    x = jax.random.normal(kx, (2, 3, 4, 4), jnp.float32)
    params = make_params(kp)

    out = broadcast_add_forward(x, params)
    jax.block_until_ready(out)
    assert out.shape == (2, 128, 4, 4) and out.dtype == jnp.float32

    # Loose tolerance: the kernel feeds the MXU bf16 operands (f32 accumulate),
    # the reference is pure f32.
    ref = reference_forward(x, params)
    max_err = float(jnp.max(jnp.abs(out - ref)))
    assert max_err < 1e-1, f"max abs error vs f32 reference: {max_err}"

    print("KERNEL_OK")
</pallas_src>

<mosaic_0001>
module attributes {stable_mosaic.version = 11 : i64} {
  func.func @_fused_conv_bn_relu_pool_add_kernel(%arg0: i32, %arg1: memref<32x27xbf16, #tpu.memory_space<vmem>>, %arg2: memref<27x128xbf16, #tpu.memory_space<vmem>>, %arg3: memref<1x128xf32, #tpu.memory_space<vmem>>, %arg4: memref<1x128xf32, #tpu.memory_space<vmem>>, %arg5: memref<2x16x128xf32, #tpu.memory_space<vmem>>) attributes {dimension_semantics = [#tpu.dimension_semantics<arbitrary>], iteration_bounds = array<i64: 1>, scalar_prefetch = 0 : i64, scratch_operands = 0 : i64, tpu.core_type = #tpu.core_type<tc>, window_params = [{pipeline_mode = #tpu.pipeline_mode<synchronous>, transform_indices = @transform_0, window_bounds = array<i64: 32, 27>}, {pipeline_mode = #tpu.pipeline_mode<synchronous>, transform_indices = @transform_1, window_bounds = array<i64: 27, 128>}, {pipeline_mode = #tpu.pipeline_mode<synchronous>, transform_indices = @transform_2, window_bounds = array<i64: 1, 128>}, {pipeline_mode = #tpu.pipeline_mode<synchronous>, transform_indices = @transform_3, window_bounds = array<i64: 1, 128>}, {pipeline_mode = #tpu.pipeline_mode<synchronous>, transform_indices = @transform_4, window_bounds = array<i64: 2, 16, 128>}]} {
    %c0 = arith.constant 0 : index
    %c0_0 = arith.constant 0 : index
    %0 = vector.load %arg1[%c0, %c0_0] : memref<32x27xbf16, #tpu.memory_space<vmem>>, vector<32x27xbf16>
    %c0_1 = arith.constant 0 : index
    %c0_2 = arith.constant 0 : index
    %1 = vector.load %arg2[%c0_1, %c0_2] : memref<27x128xbf16, #tpu.memory_space<vmem>>, vector<27x128xbf16>
    %cst = arith.constant dense<0.000000e+00> : vector<32x128xf32>
    %2 = tpu.matmul %0, %1, %cst {dimension_numbers = #tpu.dot_dimension_numbers<[1], [0], [0], [1], [0, 0, 1, 1], [], []>} : vector<32x27xbf16>, vector<27x128xbf16>, vector<32x128xf32> -> vector<32x128xf32>
    %cst_3 = arith.constant dense<0.000000e+00> : vector<128xf32>
    %3 = vector.multi_reduction <add>, %2, %cst_3 [0] : vector<32x128xf32> to vector<128xf32>
    %4 = vector.shape_cast %3 : vector<128xf32> to vector<1x128xf32>
    %cst_4 = arith.constant 3.200000e+01 : f32
    %5 = vector.broadcast %cst_4 : f32 to vector<1x128xf32>
    %6 = arith.divf %4, %5 : vector<1x128xf32>
    %7 = vector.broadcast %6 : vector<1x128xf32> to vector<32x128xf32>
    %8 = arith.subf %2, %7 : vector<32x128xf32>
    %9 = arith.mulf %8, %8 : vector<32x128xf32>
    %cst_5 = arith.constant dense<0.000000e+00> : vector<128xf32>
    %10 = vector.multi_reduction <add>, %9, %cst_5 [0] : vector<32x128xf32> to vector<128xf32>
    %11 = vector.shape_cast %10 : vector<128xf32> to vector<1x128xf32>
    %cst_6 = arith.constant 3.200000e+01 : f32
    %12 = vector.broadcast %cst_6 : f32 to vector<1x128xf32>
    %13 = arith.divf %11, %12 : vector<1x128xf32>
    %14 = vector.broadcast %6 : vector<1x128xf32> to vector<32x128xf32>
    %15 = arith.subf %2, %14 : vector<32x128xf32>
    %cst_7 = arith.constant 9.99999974E-6 : f32
    %16 = vector.broadcast %cst_7 : f32 to vector<1x128xf32>
    %17 = arith.addf %13, %16 : vector<1x128xf32>
    %18 = math.rsqrt %17 : vector<1x128xf32>
    %19 = vector.broadcast %18 : vector<1x128xf32> to vector<32x128xf32>
    %20 = arith.mulf %15, %19 : vector<32x128xf32>
    %c0_8 = arith.constant 0 : index
    %c0_9 = arith.constant 0 : index
    %21 = vector.load %arg3[%c0_8, %c0_9] : memref<1x128xf32, #tpu.memory_space<vmem>>, vector<1x128xf32>
    %22 = vector.broadcast %21 : vector<1x128xf32> to vector<32x128xf32>
    %23 = arith.mulf %20, %22 : vector<32x128xf32>
    %c0_10 = arith.constant 0 : index
    %c0_11 = arith.constant 0 : index
    %24 = vector.load %arg4[%c0_10, %c0_11] : memref<1x128xf32, #tpu.memory_space<vmem>>, vector<1x128xf32>
    %25 = vector.broadcast %24 : vector<1x128xf32> to vector<32x128xf32>
    %26 = arith.addf %23, %25 : vector<32x128xf32>
    %cst_12 = arith.constant 0.000000e+00 : f32
    %27 = vector.broadcast %cst_12 : f32 to vector<32x128xf32>
    %28 = arith.maximumf %26, %27 : vector<32x128xf32>
    %29 = vector.shape_cast %28 : vector<32x128xf32> to vector<2x16x128xf32>
    %cst_13 = arith.constant dense<0.000000e+00> : vector<2x128xf32>
    %30 = vector.multi_reduction <add>, %29, %cst_13 [1] : vector<2x16x128xf32> to vector<2x128xf32>
    %31 = vector.shape_cast %30 : vector<2x128xf32> to vector<2x1x128xf32>
    %cst_14 = arith.constant 1.600000e+01 : f32
    %32 = vector.broadcast %cst_14 : f32 to vector<2x1x128xf32>
    %33 = arith.divf %31, %32 : vector<2x1x128xf32>
    %34 = vector.broadcast %33 : vector<2x1x128xf32> to vector<2x16x128xf32>
    %35 = arith.addf %29, %34 : vector<2x16x128xf32>
    %c0_15 = arith.constant 0 : index
    %c0_16 = arith.constant 0 : index
    %c0_17 = arith.constant 0 : index
    %36 = vector.load %arg5[%c0_15, %c0_16, %c0_17] : memref<2x16x128xf32, #tpu.memory_space<vmem>>, vector<2x16x128xf32>
    tpu.vector_store %arg5[%c0_15, %c0_16, %c0_17], %35 {strides = array<i32>} : memref<2x16x128xf32, #tpu.memory_space<vmem>>, vector<2x16x128xf32>,
    return
  }
  func.func @transform_0(%arg0: i32) -> (i32, i32) {
    %c0_i32 = arith.constant 0 : i32
    %c0_i32_0 = arith.constant 0 : i32
    %c0_i32_1 = arith.constant 0 : i32
    return %c0_i32, %c0_i32_0 : i32, i32
  }
  func.func @transform_1(%arg0: i32) -> (i32, i32) {
    %c0_i32 = arith.constant 0 : i32
    %c0_i32_0 = arith.constant 0 : i32
    %c0_i32_1 = arith.constant 0 : i32
    return %c0_i32, %c0_i32_0 : i32, i32
  }
  func.func @transform_2(%arg0: i32) -> (i32, i32) {
    %c0_i32 = arith.constant 0 : i32
    %c0_i32_0 = arith.constant 0 : i32
    %c0_i32_1 = arith.constant 0 : i32
    return %c0_i32, %c0_i32_0 : i32, i32
  }
  func.func @transform_3(%arg0: i32) -> (i32, i32) {
    %c0_i32 = arith.constant 0 : i32
    %c0_i32_0 = arith.constant 0 : i32
    %c0_i32_1 = arith.constant 0 : i32
    return %c0_i32, %c0_i32_0 : i32, i32
  }
  func.func @transform_4(%arg0: i32) -> (i32, i32, i32) {
    %c0_i32 = arith.constant 0 : i32
    %c0_i32_0 = arith.constant 0 : i32
    %c0_i32_1 = arith.constant 0 : i32
    %c0_i32_2 = arith.constant 0 : i32
    return %c0_i32, %c0_i32_0, %c0_i32_1 : i32, i32, i32
  }
}

</mosaic_0001>

<llo_original>
// kernel: tpu_custom_call.1
$region0: #{tpu_custom_call.1}
  #allocation0 [shape = 'u32[]', space=smem, size = 0x4, offset = 0x4, fixed_abs, tag = 'smem constant byte address 0x4 - core index']
  #allocation1 [shape = 'u32[144,128]{1,0:T(1,128)}', space=vmem, size = 0x12000, scoped, tag = 'internal scratch']
  %s0 = inlined_call_operand.hbm [shape: bf16[32,27], index: 0, kind: input, shape index: {}]
  %s1 = inlined_call_operand.hbm [shape: bf16[27,128], index: 1, kind: input, shape index: {}]
  %s2 = inlined_call_operand.vmem [shape: f32[1,128], index: 2, kind: input, shape index: {}]
  %s3 = inlined_call_operand.vmem [shape: f32[1,128], index: 3, kind: input, shape index: {}]
  %s4 = inlined_call_operand.hbm [shape: f32[2,16,128], index: 4, kind: output, shape index: {}]
  %s5 = sld [smem:[#allocation0]]
  $region34: #{tpu_custom_call.1} parent=0
    _
  %s7 = ssub.s32 1, %s5
  %s8 = scalar_select 0, %s7, %s5
  $region1: #{tpu_custom_call.1} parent=0
    #allocation2 [shape = 'u8[8192]{0}', space=vmem, size = 0x2000, scoped, tag = 'input window, operand 0, single buffered']
    #allocation3 [shape = 's32[1]{0}', space=sflag, size = 0x4, scoped, tag = 'scoped memory for tpu_custom_call.1']
    #allocation4 [shape = 's32[1]{0}', space=sflag, size = 0x4, scoped, tag = 'scoped memory for tpu_custom_call.1']
    #allocation5 [shape = 'u8[8192]{0}', space=vmem, size = 0x2000, scoped, tag = 'input window, operand 1, single buffered']
    #allocation6 [shape = 's32[1]{0}', space=sflag, size = 0x4, scoped, tag = 'scoped memory for tpu_custom_call.1']
    #allocation7 [shape = 'u8[16384]{0}', space=vmem, size = 0x4000, scoped, tag = 'output window, operand 0, single buffered']
    %9 = vsyncpa [#allocation3], 0
    %10 = vsyncpa [#allocation6], 0
    %11 = vsyncpa [#allocation4], 0
    // Predicated region
    $region2: #{tpu_custom_call.1} parent=1 // pred_check
      _
    $region3: #{tpu_custom_call.1} parent=1 // pred_check_branch
      %13 = sbr.rel (0) target = $region5
    $region4: #{tpu_custom_call.1} parent=1 // pred_region
      %s15 = ssub.s32 256, 256
      %16 = vsyncadd [#allocation3], %s15
      %s17 = sshll.u32 [#allocation2], 4
      %s18 = int_to_ptr.vmem [resolvable:$true] %s17
      %23 = dma.hbm_to_vmem [thread:$0]  %s0, 256, %s18, [#allocation3], 64, 64, 4
    $region5: #{tpu_custom_call.1} parent=1 // pred_fallthru
      _
    // Predicated region
    $region6: #{tpu_custom_call.1} parent=1 // pred_check
      _
    $region7: #{tpu_custom_call.1} parent=1 // pred_check_branch
      %25 = sbr.rel (0) target = $region9
    $region8: #{tpu_custom_call.1} parent=1 // pred_region
      %s27 = ssub.s32 256, 256
      %28 = vsyncadd [#allocation6], %s27
      %s29 = sshll.u32 [#allocation5], 4
      %s30 = int_to_ptr.vmem [resolvable:$true] %s29
      %35 = dma.hbm_to_vmem [thread:$0]  %s1, 256, %s30, [#allocation6], 64, 64, 4
    $region9: #{tpu_custom_call.1} parent=1 // pred_fallthru
      _
    // Predicated region
    $region10: #{tpu_custom_call.1} parent=1 // pred_check
      _
    $region11: #{tpu_custom_call.1} parent=1 // pred_check_branch
      %37 = sbr.rel (0) target = $region13
    $region12: #{tpu_custom_call.1} parent=1 // pred_region
      _
    $region13: #{tpu_custom_call.1} parent=1 // pred_fallthru
      _
    // Predicated region
    $region14: #{tpu_custom_call.1} parent=1 // pred_check
      _
    $region15: #{tpu_custom_call.1} parent=1 // pred_check_branch
      %39 = sbr.rel (0) target = $region17
    $region16: #{tpu_custom_call.1} parent=1 // pred_region
      _
    $region17: #{tpu_custom_call.1} parent=1 // pred_fallthru
      _
    // Predicated region
    $region18: #{tpu_custom_call.1} parent=1 // pred_check
      _
    $region19: #{tpu_custom_call.1} parent=1 // pred_check_branch
      %41 = sbr.rel (0) target = $region21
    $region20: #{tpu_custom_call.1} parent=1 // pred_region
      %42 = dma.done [#allocation3], 256
    $region21: #{tpu_custom_call.1} parent=1 // pred_fallthru
      _
    // Predicated region
    $region22: #{tpu_custom_call.1} parent=1 // pred_check
      _
    $region23: #{tpu_custom_call.1} parent=1 // pred_check_branch
      %44 = sbr.rel (0) target = $region25
    $region24: #{tpu_custom_call.1} parent=1 // pred_region
      %45 = dma.done [#allocation6], 256
    $region25: #{tpu_custom_call.1} parent=1 // pred_fallthru
      _
    %v47 = vld [vmem:[#allocation2] sm:$0xf]
    %v48 = vld [vmem:[#allocation2 + $0x4] sm:$0xf]
    %v49 = vld [vmem:[#allocation2 + $0x8] sm:$0xf]
    %v50 = vld [vmem:[#allocation2 + $0xc] sm:$0xf]
    %v51 = vld [vmem:[#allocation5] sm:$0xf]
    %v52 = vld [vmem:[#allocation5 + $0x4] sm:$0xf]
    %v53 = vld [vmem:[#allocation5 + $0x8] sm:$0xf]
    %v54 = vld [vmem:[#allocation5 + $0xc] sm:$0x3]
    %v59 = vunpack.c.l.b16 %v47
    %v60 = vunpack.c.l.b16 %v48
    %v61 = vunpack.c.l.b16 %v49
    %v62 = vunpack.c.l.b16 %v50
    %v63 = vpack.c.b16 %v60, %v59
    %v64 = vpack.c.b16 %v62, %v61
    %v69 = vunpack.c.l.b16 %v51
    %v70 = vunpack.c.l.b16 %v52
    %v71 = vunpack.c.l.b16 %v53
    %v72 = vunpack.c.l.b16 %v54
    %v73 = vpack.c.b16 %v70, %v69
    %v74 = vpack.c.b16 %v72, %v71
    %vm76 = vcmask 220160
    %v78 = vsel %vm76, %v63, 0
    %v81 = vsel %vm76, %v64, 0
    %vm83 = vcmask 1044480
    %vm84 = vcmask 1045504
    %v85 = vsel %vm83, 4294967295, 65535
    %v86 = vsel %vm84, %v85, 0
    %v88 = vand.u32 %v74, %v86
    %90 = vmatprep.subr.bf16.mxu0 0
    %91 = vmatpush1.bf16.msra.mxu0 %v73
    %92 = vmatprep.subr.bf16.mxu0 0
    %93 = vmatpush1.bf16.msra.mxu0 %v88
    %94 = vmatprep.subr.bf16.mxu0 0
    %95 = vmatpush1.bf16.msra.mxu0 0
    %96 = vmatprep.subr.bf16.mxu0 0
    %97 = vmatpush1.bf16.msra.mxu0 0
    %98 = vmatprep.subr.bf16.mxu0 0
    %99 = vmatpush1.bf16.msra.mxu0 0
    %100 = vmatprep.subr.bf16.mxu0 0
    %101 = vmatpush1.bf16.msra.mxu0 0
    %102 = vmatprep.subr.bf16.mxu0 0
    %103 = vmatpush1.bf16.msra.mxu0 0
    %104 = vmatprep.subr.bf16.mxu0 0
    %105 = vmatpush1.bf16.msra.mxu0 0
    %106 = vmatprep.subr.bf16.mxu0 0
    %107 = vmatpush1.bf16.msra.mxu0 0
    %108 = vmatprep.subr.bf16.mxu0 0
    %109 = vmatpush1.bf16.msra.mxu0 0
    %110 = vmatprep.subr.bf16.mxu0 0
    %111 = vmatpush1.bf16.msra.mxu0 0
    %112 = vmatprep.subr.bf16.mxu0 0
    %113 = vmatpush1.bf16.msra.mxu0 0
    %114 = vmatprep.subr.bf16.mxu0 0
    %115 = vmatpush1.bf16.msra.mxu0 0
    %116 = vmatprep.subr.bf16.mxu0 0
    %117 = vmatpush1.bf16.msra.mxu0 0
    %118 = vmatprep.subr.bf16.mxu0 0
    %119 = vmatpush1.bf16.msra.mxu0 0
    %120 = vmatprep.subr.bf16.mxu0 0
    %121 = vmatpush1.bf16.msra.mxu0 0
    %122 = vmatprep.mubr.bf16.mxu0 0
    %123 = vmatmul.mubr.bf16.gmra.mrb[0].mxu0 %v78
    %v124 = vpop.f32.mrb[0].mxu0
    %v125 = vadd.f32 0.0, %v124
    %v126 = vpop.f32.mrb[0].mxu0
    %v127 = vpop.f32.mrb[0].mxu0
    %v128 = vadd.f32 0.0, %v127
    %v129 = vpop.f32.mrb[0].mxu0
    %130 = vmatprep.mubr.bf16.mxu0 0
    %131 = vmatmul.mubr.bf16.gmra.mrb[0].mxu0 %v81
    %v132 = vpop.f32.mrb[0].mxu0
    %v133 = vadd.f32 0.0, %v132
    %v134 = vpop.f32.mrb[0].mxu0
    %v135 = vpop.f32.mrb[0].mxu0
    %v136 = vadd.f32 0.0, %v135
    %v137 = vpop.f32.mrb[0].mxu0
    %138 = vdwg.mxu0
    %v139 = vadd.f32 %v125, %v128
    %v140 = vadd.f32 %v139, %v133
    %v141 = vadd.f32 %v140, %v136
    %v142 = vrot.slane %v141, 4
    %v143 = vadd.f32 %v141, %v142
    %v144 = vrot.slane %v143, 2
    %v145 = vadd.f32 %v143, %v144
    %v146 = vrot.slane %v145, 1
    %v147 = vadd.f32 %v145, %v146
    %v148 = vrcp.pop 32.0
    %v149 = vmul.f32 %v147, %v148
    %v150 = vsub.f32 %v125, %v149
    %v151 = vsub.f32 %v128, %v149
    %v152 = vsub.f32 %v133, %v149
    %v153 = vsub.f32 %v136, %v149
    %v154 = vmul.f32 %v150, %v150
    %v155 = vmul.f32 %v151, %v151
    %v156 = vmul.f32 %v152, %v152
    %v157 = vmul.f32 %v153, %v153
    %v158 = vadd.f32 %v154, %v155
    %v159 = vadd.f32 %v158, %v156
    %v160 = vadd.f32 %v159, %v157
    %v161 = vrot.slane %v160, 4
    %v162 = vadd.f32 %v160, %v161
    %v163 = vrot.slane %v162, 2
    %v164 = vadd.f32 %v162, %v163
    %v165 = vrot.slane %v164, 1
    %v166 = vadd.f32 %v164, %v165
    %v167 = vmul.f32 %v166, %v148
    %v168 = vadd.f32 %v167, 1e-05
    %v169 = vrsqrt.pop %v168
    %v170 = vmul.f32 %v150, %v169
    %v171 = vmul.f32 %v151, %v169
    %v172 = vmul.f32 %v152, %v169
    %v173 = vmul.f32 %v153, %v169
    %v174 = vld [vmem:[%s2] sm:$0x1]
    %v176 = vlaneseq
    %v177 = vshrl.u32 %v176, 7
    %v178 = vsub.s32 0, %v177
    %v179 = vrot.slane %v174, %v178
    %v181 = vmul.f32 %v170, %v179
    %v182 = vmul.f32 %v171, %v179
    %v183 = vmul.f32 %v172, %v179
    %v184 = vmul.f32 %v173, %v179
    %v185 = vld [vmem:[%s3] sm:$0x1]
    %v187 = vlaneseq
    %v188 = vshrl.u32 %v187, 7
    %v189 = vsub.s32 0, %v188
    %v190 = vrot.slane %v185, %v189
    %v192 = vadd.f32 %v181, %v190
    %v193 = vadd.f32 %v182, %v190
    %v194 = vadd.f32 %v183, %v190
    %v195 = vadd.f32 %v184, %v190
    %v196 = vmax.f32 %v192, 0.0
    %v197 = vmax.f32 %v193, 0.0
    %v198 = vmax.f32 %v194, 0.0
    %v199 = vmax.f32 %v195, 0.0
    %v200 = vadd.f32 %v196, %v197
    %v201 = vrot.slane %v200, 4
    %v202 = vadd.f32 %v200, %v201
    %v203 = vrot.slane %v202, 2
    %v204 = vadd.f32 %v202, %v203
    %v205 = vrot.slane %v204, 1
    %v206 = vadd.f32 %v204, %v205
    %v207 = vadd.f32 %v198, %v199
    %v208 = vrot.slane %v207, 4
    %v209 = vadd.f32 %v207, %v208
    %v210 = vrot.slane %v209, 2
    %v211 = vadd.f32 %v209, %v210
    %v212 = vrot.slane %v211, 1
    %v213 = vadd.f32 %v211, %v212
    %v214 = vrcp.pop 16.0
    %v215 = vmul.f32 %v206, %v214
    %v216 = vmul.f32 %v213, %v214
    %v217 = vadd.f32 %v196, %v215
    %v218 = vadd.f32 %v197, %v215
    %v219 = vadd.f32 %v198, %v216
    %v220 = vadd.f32 %v199, %v216
    %221 = vst [vmem:[#allocation7] sm:$0xff] %v217
    %222 = vst [vmem:[#allocation7 + $0x8] sm:$0xff] %v218
    %223 = vst [vmem:[#allocation7 + $0x10] sm:$0xff] %v219
    %224 = vst [vmem:[#allocation7 + $0x18] sm:$0xff] %v220
    // Predicated region
    $region26: #{tpu_custom_call.1} parent=1 // pred_check
      _
    $region27: #{tpu_custom_call.1} parent=1 // pred_check_branch
      %226 = sbr.rel (0) target = $region29
    $region28: #{tpu_custom_call.1} parent=1 // pred_region
      %s228 = ssub.s32 512, 512
      %229 = vsyncadd [#allocation4], %s228
      %s230 = sshll.u32 [#allocation7], 4
      %s231 = int_to_ptr.vmem [resolvable:$true] %s230
      %236 = dma.vmem_to_hbm [thread:$0]  %s231, 512, %s4, [#allocation4], 128, 128, 8
    $region29: #{tpu_custom_call.1} parent=1 // pred_fallthru
      _
    // Predicated region
    $region30: #{tpu_custom_call.1} parent=1 // pred_check
      _
    $region31: #{tpu_custom_call.1} parent=1 // pred_check_branch
      %238 = sbr.rel (0) target = $region33
    $region32: #{tpu_custom_call.1} parent=1 // pred_region
      %239 = dma.done [#allocation4], 512
    $region33: #{tpu_custom_call.1} parent=1 // pred_fallthru
      _
    %240 = vsyncpa [#allocation3], 1
    %241 = vsyncpa [#allocation6], 1
    %242 = vsyncpa [#allocation4], 1

</llo_original>
